<compile_context>
chip_gen: v7x
topology: tpu7x:2x2x1
jax: 0.10.0
libtpu: 0.0.40
codegen_flags: <defaults>
</compile_context>

<pallas_src>
import functools

import jax
import jax.numpy as jnp
from jax.experimental import pallas as pl
from jax.experimental.pallas import tpu as pltpu

LANE = 128
SUBLANE = 8

_BLOCK_TARGET_ELEMS = 512 * 1024        # ~2 MiB of f32 per block (two-pass path)
_FUSED_MAX_BYTES = 4 * 1024 * 1024      # fuse max+quantize for tensors <= 4 MiB
_VMEM_LIMIT_BYTES = 32 * 1024 * 1024    # safe on v5e/v6e (128 MiB) and v7x (64 MiB)


def _fused_kernel(n_lv, x_ref, o_ref):
    """Single-block fused path: global max + quantize in one HBM round trip."""
    x = x_ref[...].astype(jnp.float32)
    ub = jnp.max(x)
    # If ub <= 0 the scale is inf / negative — this matches the PyTorch module.
    scale = n_lv / ub
    inv_scale = 1.0 / scale            # scalar; per-element multiply, not divide
    o_ref[...] = (jnp.round(x * scale) * inv_scale).astype(o_ref.dtype)


def _partial_max_kernel(block_rows, total_rows, x_ref, o_ref):
    """Per-block (8, cols) partial max; steady state is pure VPU elementwise max."""
    i = pl.program_id(0)
    x = x_ref[...].astype(jnp.float32)
    cols = x.shape[-1]

    def tile_max(v):
        # (block_rows, cols) -> (block_rows//8, 8, cols) is layout-preserving;
        # the axis-0 reduce is an elementwise max over (8,128) tiles (no XLU
        # work and no per-step scalar read-modify-write).
        return jnp.max(v.reshape(block_rows // SUBLANE, SUBLANE, cols), axis=0)

    @pl.when(i != pl.num_programs(0) - 1)
    def _():
        o_ref[...] = tile_max(x)

    @pl.when(i == pl.num_programs(0) - 1)
    def _():
        # The last block may extend past `total_rows`; Pallas leaves that region
        # of the input buffer undefined, so mask it with -inf before reducing.
        rid = jax.lax.broadcasted_iota(jnp.int32, x.shape, 0) + i * block_rows
        o_ref[...] = tile_max(jnp.where(rid < total_rows, x, -jnp.inf))


def _quant_kernel(n_lv, ub_ref, x_ref, o_ref):
    """Elementwise symmetric quantization; ub broadcast from a (1,1) SMEM scalar."""
    scale = n_lv / ub_ref[0, 0]
    inv_scale = 1.0 / scale
    x = x_ref[...].astype(jnp.float32)
    o_ref[...] = (jnp.round(x * scale) * inv_scale).astype(o_ref.dtype)


def _pick_view(x):
    """Copy-free 2D view (rows, cols): prefer lane-dense cols (multiple of 128)."""
    total = x.size
    for cols in (1024, 512, 256, 128):
        if total % cols == 0 and total // cols >= SUBLANE:
            return total // cols, cols
    for cols in (1024, 512, 256, 128):
        if total % cols == 0:
            return total // cols, cols
    # TODO(synk): element counts not divisible by 128 fall back to a (rows, W)
    # view; still copy-free, but DMAs are no longer lane dense.
    cols = x.shape[-1]
    return total // cols, cols


def aq_symm_forward(x, abit):
    """JAX/Pallas equivalent of AQ_Symm.forward for an NCHW input."""
    if x.shape[1] <= 3:                # static channel check, like the PyTorch module
        return x

    n_lv = float(2 ** (abit - 1) - 1)
    orig_shape = x.shape
    rows, cols = _pick_view(x)
    x2d = x.reshape(rows, cols)        # contiguous reshape: free, no HBM copy
    total_bytes = x.size * x.dtype.itemsize

    if total_bytes <= _FUSED_MAX_BYTES or rows < SUBLANE:
        # --- Fused single kernel: load once, global max, quantize, store. ---
        out2d = pl.pallas_call(
            functools.partial(_fused_kernel, n_lv),
            out_shape=jax.ShapeDtypeStruct((rows, cols), x.dtype),
            grid=(1,),
            in_specs=[pl.BlockSpec((rows, cols), lambda i: (0, 0))],
            out_specs=pl.BlockSpec((rows, cols), lambda i: (0, 0)),
            compiler_params=pltpu.CompilerParams(
                dimension_semantics=("arbitrary",),
                vmem_limit_bytes=_VMEM_LIMIT_BYTES),
        )(x2d)
        return out2d.reshape(orig_shape)

    # ---- Two-pass path for tensors that do not comfortably fit VMEM. ----
    block_rows = max(SUBLANE, (_BLOCK_TARGET_ELEMS // cols) // SUBLANE * SUBLANE)
    block_rows = min(block_rows, max(SUBLANE, rows - rows % SUBLANE))
    num_blocks = pl.cdiv(rows, block_rows)

    # Pass 1: per-block partial maxes (parallel / megacore-friendly), tiny XLA reduce.
    partial = pl.pallas_call(
        functools.partial(_partial_max_kernel, block_rows, rows),
        out_shape=jax.ShapeDtypeStruct((num_blocks * SUBLANE, cols), jnp.float32),
        grid=(num_blocks,),
        in_specs=[pl.BlockSpec((block_rows, cols), lambda i: (i, 0))],
        out_specs=pl.BlockSpec((SUBLANE, cols), lambda i: (i, 0)),
        compiler_params=pltpu.CompilerParams(
            dimension_semantics=("parallel",),
            vmem_limit_bytes=_VMEM_LIMIT_BYTES),
    )(x2d)
    ub = jnp.max(partial).astype(jnp.float32).reshape(1, 1)

    # Pass 2: elementwise quantize with ub broadcast from SMEM (OOB rows of the
    # ragged last block are simply dropped by Pallas on writeback).
    out2d = pl.pallas_call(
        functools.partial(_quant_kernel, n_lv),
        out_shape=jax.ShapeDtypeStruct((rows, cols), x.dtype),
        grid=(num_blocks,),
        in_specs=[
            pl.BlockSpec(memory_space=pltpu.SMEM),
            pl.BlockSpec((block_rows, cols), lambda i: (i, 0)),
        ],
        out_specs=pl.BlockSpec((block_rows, cols), lambda i: (i, 0)),
        compiler_params=pltpu.CompilerParams(
            dimension_semantics=("parallel",),
            vmem_limit_bytes=_VMEM_LIMIT_BYTES),
    )(ub, x2d)

    return out2d.reshape(orig_shape)


def aq_symm_reference(x, abit):
    """Pure-JAX reference mirroring the PyTorch forward."""
    if x.shape[1] <= 3:
        return x
    n_lv = float(2 ** (abit - 1) - 1)
    scale = n_lv / jnp.max(x)
    return jnp.round(x * scale) / scale


if __name__ == "__main__":
    abit = 4

    # Small NCHW input, C=4 (>3) -> fused single-kernel path.
    x = jax.random.normal(jax.random.PRNGKey(0), (2, 4, 16, 16), dtype=jnp.float32)
    out = jax.block_until_ready(aq_symm_forward(x, abit))
    ref = aq_symm_reference(x, abit)
    assert out.shape == x.shape and out.dtype == x.dtype
    assert jnp.allclose(out, ref, atol=1e-5, rtol=1e-5), "fused path mismatch"

    # Passthrough branch (C <= 3).
    x_small = jax.random.normal(jax.random.PRNGKey(1), (2, 3, 16, 16), jnp.float32)
    out_small = jax.block_until_ready(aq_symm_forward(x_small, abit))
    assert jnp.array_equal(out_small, x_small)

    # Larger input exercising the tiled two-pass path (incl. a ragged last block).
    x_big = jax.random.normal(jax.random.PRNGKey(2), (2, 36, 128, 128), jnp.float32)
    out_big = jax.block_until_ready(aq_symm_forward(x_big, abit))
    ref_big = aq_symm_reference(x_big, abit)
    assert jnp.allclose(out_big, ref_big, atol=1e-5, rtol=1e-5), "two-pass mismatch"

    print("KERNEL_OK")
</pallas_src>

<mosaic_0001>
module attributes {stable_mosaic.version = 11 : i64} {
  func.func @_fused_kernel(%arg0: i32, %arg1: memref<8x256xf32, #tpu.memory_space<vmem>>, %arg2: memref<8x256xf32, #tpu.memory_space<vmem>>) attributes {dimension_semantics = [#tpu.dimension_semantics<arbitrary>], iteration_bounds = array<i64: 1>, scalar_prefetch = 0 : i64, scratch_operands = 0 : i64, tpu.core_type = #tpu.core_type<tc>, window_params = [{pipeline_mode = #tpu.pipeline_mode<synchronous>, transform_indices = @transform_0, window_bounds = array<i64: 8, 256>}, {pipeline_mode = #tpu.pipeline_mode<synchronous>, transform_indices = @transform_1, window_bounds = array<i64: 8, 256>}]} {
    %c0 = arith.constant 0 : index
    %c0_0 = arith.constant 0 : index
    %0 = vector.load %arg1[%c0, %c0_0] : memref<8x256xf32, #tpu.memory_space<vmem>>, vector<8x256xf32>
    %1 = vector.shape_cast %0 : vector<8x256xf32> to vector<1x8x256xf32>
    %cst = arith.constant dense<0xFF800000> : vector<1xf32>
    %2 = vector.multi_reduction <maximumf>, %1, %cst [1, 2] : vector<1x8x256xf32> to vector<1xf32>
    %3 = vector.shape_cast %2 : vector<1xf32> to vector<1x1x1xf32>
    %4 = vector.extract %3[0, 0, 0] : f32 from vector<1x1x1xf32>
    %cst_1 = arith.constant 7.000000e+00 : f32
    %5 = arith.divf %cst_1, %4 : f32
    %cst_2 = arith.constant 1.000000e+00 : f32
    %6 = arith.divf %cst_2, %5 : f32
    %7 = vector.broadcast %5 : f32 to vector<8x256xf32>
    %8 = arith.mulf %0, %7 : vector<8x256xf32>
    %9 = math.roundeven %8 : vector<8x256xf32>
    %10 = vector.broadcast %6 : f32 to vector<8x256xf32>
    %11 = arith.mulf %9, %10 : vector<8x256xf32>
    %c0_3 = arith.constant 0 : index
    %c0_4 = arith.constant 0 : index
    %12 = vector.load %arg2[%c0_3, %c0_4] : memref<8x256xf32, #tpu.memory_space<vmem>>, vector<8x256xf32>
    tpu.vector_store %arg2[%c0_3, %c0_4], %11 {strides = array<i32>} : memref<8x256xf32, #tpu.memory_space<vmem>>, vector<8x256xf32>,
    return
  }
  func.func @transform_0(%arg0: i32) -> (i32, i32) {
    %c0_i32 = arith.constant 0 : i32
    %c0_i32_0 = arith.constant 0 : i32
    %c0_i32_1 = arith.constant 0 : i32
    return %c0_i32, %c0_i32_0 : i32, i32
  }
  func.func @transform_1(%arg0: i32) -> (i32, i32) {
    %c0_i32 = arith.constant 0 : i32
    %c0_i32_0 = arith.constant 0 : i32
    %c0_i32_1 = arith.constant 0 : i32
    return %c0_i32, %c0_i32_0 : i32, i32
  }
}

</mosaic_0001>

<llo_original>
// kernel: tpu_custom_call.1
$region0: #{tpu_custom_call.1}
  #allocation0 [shape = 'u32[]', space=smem, size = 0x4, offset = 0x4, fixed_abs, tag = 'smem constant byte address 0x4 - core index']
  #allocation1 [shape = 'u32[144,128]{1,0:T(1,128)}', space=vmem, size = 0x12000, scoped, tag = 'internal scratch']
  %s0 = inlined_call_operand.hbm [shape: f32[8,256], index: 0, kind: input, shape index: {}]
  %s1 = inlined_call_operand.hbm [shape: f32[8,256], index: 1, kind: output, shape index: {}]
  %s2 = sld [smem:[#allocation0]]
  $region18: #{tpu_custom_call.1} parent=0
    _
  %s4 = ssub.s32 1, %s2
  %s5 = scalar_select 0, %s4, %s2
  $region1: #{tpu_custom_call.1} parent=0
    #allocation2 [shape = 'u8[8192]{0}', space=vmem, size = 0x2000, scoped, tag = 'input window, operand 0, single buffered']
    #allocation3 [shape = 's32[1]{0}', space=sflag, size = 0x4, scoped, tag = 'scoped memory for tpu_custom_call.1']
    #allocation4 [shape = 's32[1]{0}', space=sflag, size = 0x4, scoped, tag = 'scoped memory for tpu_custom_call.1']
    #allocation5 [shape = 'u8[8192]{0}', space=vmem, size = 0x2000, scoped, tag = 'output window, operand 0, single buffered']
    %6 = vsyncpa [#allocation3], 0
    %7 = vsyncpa [#allocation4], 0
    // Predicated region
    $region2: #{tpu_custom_call.1} parent=1 // pred_check
      _
    $region3: #{tpu_custom_call.1} parent=1 // pred_check_branch
      %9 = sbr.rel (0) target = $region5
    $region4: #{tpu_custom_call.1} parent=1 // pred_region
      %s11 = ssub.s32 256, 256
      %12 = vsyncadd [#allocation3], %s11
      %s14 = sshll.u32 [#allocation2], 4
      %s15 = int_to_ptr.vmem [resolvable:$true] %s14
      %17 = dma.hbm_to_vmem [thread:$0]  %s0, 256, %s15, [#allocation3]
    $region5: #{tpu_custom_call.1} parent=1 // pred_fallthru
      _
    // Predicated region
    $region6: #{tpu_custom_call.1} parent=1 // pred_check
      _
    $region7: #{tpu_custom_call.1} parent=1 // pred_check_branch
      %19 = sbr.rel (0) target = $region9
    $region8: #{tpu_custom_call.1} parent=1 // pred_region
      %20 = dma.done [#allocation3], 256
    $region9: #{tpu_custom_call.1} parent=1 // pred_fallthru
      _
    %v21 = vld [vmem:[#allocation2] sm:$0xff]
    %v22 = vld [vmem:[#allocation2 + $0x8] sm:$0xff]
    %v23 = vmax.f32 %v21, %v22
    %24 = vmax.xlane.f32.xlu0 %v23
    %v25 = vpop.xlane.xlu0 %24
    %v26 = vrot.slane %v25, 4
    %v27 = vmax.f32 %v25, %v26
    %v28 = vrot.slane %v27, 2
    %v29 = vmax.f32 %v27, %v28
    %v30 = vrot.slane %v29, 1
    %v31 = vmax.f32 %v29, %v30
    %s32 = vtos %v31
    %v33 = vstv %s32
    %v34 = vrcp.pop %v33
    %s35 = vtos %v34
    %s36 = smul.f32 7.0, %s35
    %v37 = vstv %s36
    %v38 = vrcp.pop %v37
    %s39 = vtos %v38
    %v40 = vstv %s36
    %v41 = vmul.f32 %v21, %v40
    %v42 = vmul.f32 %v22, %v40
    %v43 = vround.ne.pseudo %v41
    %v44 = vround.ne.pseudo %v42
    %v45 = vstv %s39
    %v46 = vmul.f32 %v43, %v45
    %v47 = vmul.f32 %v44, %v45
    %48 = vst [vmem:[#allocation5] sm:$0xff] %v46
    %49 = vst [vmem:[#allocation5 + $0x8] sm:$0xff] %v47
    // Predicated region
    $region10: #{tpu_custom_call.1} parent=1 // pred_check
      _
    $region11: #{tpu_custom_call.1} parent=1 // pred_check_branch
      %51 = sbr.rel (0) target = $region13
    $region12: #{tpu_custom_call.1} parent=1 // pred_region
      %s53 = ssub.s32 256, 256
      %54 = vsyncadd [#allocation4], %s53
      %s56 = sshll.u32 [#allocation5], 4
      %s57 = int_to_ptr.vmem [resolvable:$true] %s56
      %59 = dma.vmem_to_hbm [thread:$0]  %s57, 256, %s1, [#allocation4]
    $region13: #{tpu_custom_call.1} parent=1 // pred_fallthru
      _
    // Predicated region
    $region14: #{tpu_custom_call.1} parent=1 // pred_check
      _
    $region15: #{tpu_custom_call.1} parent=1 // pred_check_branch
      %61 = sbr.rel (0) target = $region17
    $region16: #{tpu_custom_call.1} parent=1 // pred_region
      %62 = dma.done [#allocation4], 256
    $region17: #{tpu_custom_call.1} parent=1 // pred_fallthru
      _
    %63 = vsyncpa [#allocation3], 1
    %64 = vsyncpa [#allocation4], 1

</llo_original>
